<compile_context>
chip_gen: v7x
topology: tpu7x:2x2x1
jax: 0.10.0
libtpu: 0.0.40
codegen_flags: <defaults>
</compile_context>

<pallas_src>
import numpy as np
import jax
import jax.numpy as jnp
from jax import lax
from jax.experimental import pallas as pl
from jax.experimental.pallas import tpu as pltpu

# ---- static force-field constants (baked into the kernel) ----
COULOMB_PREFAC = 138.93544539709032   # kJ/mol * nm / e^2 (from the PyTorch module)
CUTOFF = 0.9                          # nm
CUTOFF2 = CUTOFF * CUTOFF
NEIGHBOR_SKIN = 0.4                   # nm (torchff builds the list at cutoff + 0.4)
PI = 3.141592653589793
HALF_PI = 0.5 * PI
_TINY = 1e-12


def _round_up(x, m):
    return ((x + m - 1) // m) * m


def _default_nsplit():
    """2 splits (one per TensorCore) on v7x, 1 on single-TC v5e/v6e."""
    try:
        kind = jax.devices()[0].device_kind.lower()
    except Exception:
        return 1
    return 2 if ("v7" in kind or "tpu7" in kind or "tpu 7" in kind) else 1


def _asin_poly(x):
    """Cephes asinf polynomial, valid for |x| <= 0.5 (few-ULP f32 accuracy)."""
    z = x * x
    p = ((((4.2163199048e-2 * z + 2.4181311049e-2) * z
           + 4.5470025998e-2) * z + 7.4953002686e-2) * z
         + 1.6666752422e-1)
    return x + x * z * p


def _acos(x):
    """float32-accurate arccos built only from +,*,sqrt,select (Mosaic-safe)."""
    ax = jnp.abs(x)
    s = jnp.sqrt(jnp.maximum(0.5 * (1.0 - ax), 0.0))
    acos_big = 2.0 * _asin_poly(s)          # |x| > 0.5
    acos_small = HALF_PI - _asin_poly(ax)   # |x| <= 0.5
    acos_abs = jnp.where(ax > 0.5, acos_big, acos_small)
    return jnp.where(x < 0.0, PI - acos_abs, acos_abs)


def energy_kernel(bond_ref, angle_ref, pair_ref, out_ref):
    c = pl.program_id(0)          # "parallel" split (megacore / 2-TC sharding)
    p = pl.program_id(1)          # "arbitrary" pair-tile axis (reduction)

    # ---- init the resident lane-dense accumulator block (one per split) ----
    @pl.when(p == 0)
    def _init():
        out_ref[...] = jnp.zeros_like(out_ref)

    # ---- bonded terms: tiny, computed once on (c==0, p==0) ----
    @pl.when(jnp.logical_and(c == 0, p == 0))
    def _bonded():
        # HarmonicBondForce : 0.5 * k * (|r_ij| - b0)^2
        bslab = bond_ref[...]                                    # (8, BW)
        dbx = bslab[0:1]; dby = bslab[1:2]; dbz = bslab[2:3]
        r2b = dbx * dbx + dby * dby + dbz * dbz
        rb = jnp.sqrt(r2b)
        b0 = bslab[3:4]
        kb = bslab[4:5]
        e_bond = 0.5 * kb * (rb - b0) ** 2                       # padded lanes: kb == 0

        # HarmonicAngleForce : 0.5 * k * (theta - th0)^2
        aslab = angle_ref[...]                                   # (8, BW)
        v1x = aslab[0:1]; v1y = aslab[1:2]; v1z = aslab[2:3]
        v2x = aslab[3:4]; v2y = aslab[4:5]; v2z = aslab[5:6]
        dot = v1x * v2x + v1y * v2y + v1z * v2z
        n1sq = v1x * v1x + v1y * v1y + v1z * v1z
        n2sq = v2x * v2x + v2y * v2y + v2z * v2z
        cosang = jnp.clip(dot * lax.rsqrt(n1sq * n2sq + _TINY), -1.0, 1.0)
        theta = _acos(cosang)
        th0 = aslab[6:7]
        ka = aslab[7:8]
        e_angle = 0.5 * ka * (theta - th0) ** 2                  # padded lanes: ka == 0

        rows_b = bond_ref.shape[1] // 128                        # static Python int
        out_ref[0:rows_b, :] += (e_bond + e_angle).reshape(rows_b, 128)

    # ---- NonbondedForce (Coulomb + LJ) over this dense SoA pair tile ----
    dx = pair_ref[0]              # (tile_m, 128) full dense planes
    dy = pair_ref[1]
    dz = pair_ref[2]
    qq = pair_ref[3]              # COULOMB_PREFAC * q_i * q_j   (zero on padded lanes)
    lj_a = pair_ref[4]            # 4 * eps_ij * sig_ij^12        (zero on padded lanes)
    lj_b = pair_ref[5]            # 4 * eps_ij * sig_ij^6         (zero on padded lanes)

    # Displacements already minimum-image wrapped host-side (see packing wrapper).
    r2 = dx * dx + dy * dy + dz * dz
    inv_r = lax.rsqrt(r2 + _TINY)                                # EUP slot; no sqrt/div on VPU
    inv_r2 = inv_r * inv_r
    inv_r6 = inv_r2 * inv_r2 * inv_r2
    e_pair = qq * inv_r + inv_r6 * (lj_a * inv_r6 - lj_b)
    # Padded lanes have r2 == 0 and zeroed parameters: every intermediate stays
    # finite in f32 (inv_r6 ~ 1e36 < f32 max) and the mask selects exactly 0.
    live = jnp.logical_and(r2 < CUTOFF2, r2 > 0.0)
    out_ref[...] += jnp.where(live, e_pair, 0.0)


# ----------------------------- glue (plain JAX / numpy) -----------------------------

def build_pairs(coords, box, rlist):
    # TODO(synk): torchff.build_neighbor_list_cell_list produces a data-dependent-shape
    # pair list; it is built host-side in numpy here (no clean Pallas equivalent).
    n = coords.shape[0]
    ii, jj = np.triu_indices(n, k=1)
    d = coords[ii] - coords[jj]
    d -= box * np.floor(d / box + 0.5)
    r = np.sqrt((d ** 2).sum(-1))
    keep = (r < rlist) & ((ii // 3) != (jj // 3))   # exclude intramolecular pairs
    return np.stack([ii[keep], jj[keep]], axis=1).astype(np.int32)


def torch_system_energy(coords, box, bonds, b0, kb, angles, th0, ka,
                        charges, sigma, epsilon, pairs, *, tile_m=128, nsplit=None):
    """Pack dense SoA slabs and run the tiled Pallas kernel; returns total energy.

    tile_m: pair-tile rows (tile = tile_m*128 pairs). 128 rows = 384 KiB/tile,
    <1 MiB double-buffered — safe on v5e/v6e (128 MiB VMEM) and v7x (64 MiB).
    nsplit: leading "parallel" grid splits; default 1 (v5e/v6e, single TC) or 2 (v7x).
    """
    if nsplit is None:
        nsplit = _default_nsplit()

    coords = np.asarray(coords, np.float64)
    box = np.asarray(box, np.float64)
    charges = np.asarray(charges, np.float64)
    sigma = np.asarray(sigma, np.float64)
    epsilon = np.asarray(epsilon, np.float64)

    nb = bonds.shape[0]
    na = angles.shape[0]

    # ---- bond / angle slabs: small fixed width, decoupled from the pair tiling ----
    bw = 128 * max(1, -(-nb // 128), -(-na // 128))

    # Bond slab: rows 0-2 = r_i - r_j, row 3 = b0, row 4 = k (zero-padded lanes -> zero energy).
    bond_slab = np.zeros((8, bw), np.float32)
    db = coords[bonds[:, 0]] - coords[bonds[:, 1]]
    bond_slab[0:3, :nb] = db.T
    bond_slab[3, :nb] = b0
    bond_slab[4, :nb] = kb

    # Angle slab: rows 0-2 = v1, rows 3-5 = v2, row 6 = th0, row 7 = k.
    angle_slab = np.zeros((8, bw), np.float32)
    v1 = coords[angles[:, 0]] - coords[angles[:, 1]]
    v2 = coords[angles[:, 2]] - coords[angles[:, 1]]
    angle_slab[0:3, :na] = v1.T
    angle_slab[3:6, :na] = v2.T
    angle_slab[6, :na] = th0
    angle_slab[7, :na] = ka

    # ---- dense SoA pair slab: (6, rows, 128); each attribute a full dense plane ----
    npair = pairs.shape[0]
    rows_needed = max(1, -(-npair // 128))
    tile_m = max(8, min(tile_m, _round_up(rows_needed, 8)))      # shrink for tiny systems
    chunk = nsplit * tile_m
    rows = _round_up(rows_needed, chunk)                         # pad rows to nsplit * tile_m
    nt = rows // chunk                                           # pair tiles per parallel split
    lanes = rows * 128

    # Bonded prologue writes into the first bw//128 rows of one accumulator block.
    # TODO(synk): if bonded terms ever outgrow tile_m*128 lanes, give them their own grid axis.
    assert bw // 128 <= tile_m

    i, j = pairs[:, 0], pairs[:, 1]
    dp = coords[i] - coords[j]
    dp -= box * np.floor(dp / box + 0.5)                         # minimum image, f64, host-side
    # TODO(synk): if coords ever become device-resident (MD steps / autodiff), move the
    # min-image wrap back in-kernel (box + 1/box via SMEM scalars) instead of baking it here.

    flat = np.zeros((6, lanes), np.float32)
    flat[0:3, :npair] = dp.T
    flat[3, :npair] = COULOMB_PREFAC * charges[i] * charges[j]
    sij = 0.5 * (sigma[i] + sigma[j])                            # Lorentz-Berthelot combining
    eij = np.sqrt(epsilon[i] * epsilon[j])
    s6 = sij ** 6
    flat[4, :npair] = 4.0 * eij * s6 * s6                        # A = 4*eps*sig^12
    flat[5, :npair] = 4.0 * eij * s6                             # B = 4*eps*sig^6
    pair_soa = flat.reshape(6, rows, 128)

    cost = pl.CostEstimate(
        flops=int(16 * lanes + 120 * bw),
        transcendentals=int(lanes + 3 * bw),
        bytes_accessed=int(pair_soa.nbytes + bond_slab.nbytes + angle_slab.nbytes
                           + nsplit * tile_m * 128 * 4))

    out = pl.pallas_call(
        energy_kernel,
        out_shape=jax.ShapeDtypeStruct((nsplit * tile_m, 128), jnp.float32),
        grid_spec=pltpu.PrefetchScalarGridSpec(
            num_scalar_prefetch=0,
            grid=(nsplit, nt),
            in_specs=[
                pl.BlockSpec((8, bw), lambda c, p: (0, 0)),                   # bonds  (resident)
                pl.BlockSpec((8, bw), lambda c, p: (0, 0)),                   # angles (resident)
                pl.BlockSpec((6, tile_m, 128),                                # pair tile (pipelined)
                             lambda c, p, nt=nt: (0, c * nt + p, 0)),
            ],
            out_specs=pl.BlockSpec((tile_m, 128), lambda c, p: (c, 0)),       # lane-dense partials
        ),
        compiler_params=pltpu.CompilerParams(
            dimension_semantics=("parallel", "arbitrary"),
            vmem_limit_bytes=32 * 1024 * 1024,
        ),
        cost_estimate=cost,
    )(jnp.asarray(bond_slab), jnp.asarray(angle_slab), jnp.asarray(pair_soa))

    # Finish the reduction of the lane-dense partial energies in the wrapper.
    return jnp.sum(out)


def build_system(key):
    """Deterministic small water-like system: 8 molecules x 3 atoms in a 2 nm box."""
    n_mol = 8
    n_atoms = 3 * n_mol
    box = np.array([2.0, 2.0, 2.0], dtype=np.float32)
    grid = np.array([[x, y, z] for x in (0.5, 1.5) for y in (0.5, 1.5) for z in (0.5, 1.5)],
                    dtype=np.float32)
    k1, k2, k3 = jax.random.split(key, 3)
    jitter = np.asarray(jax.random.uniform(k1, (n_mol, 3), minval=-0.1, maxval=0.1))
    centers = grid + jitter.astype(np.float32)
    off = np.asarray(jax.random.normal(k2, (n_mol, 2, 3))).astype(np.float32)
    off = off / np.linalg.norm(off, axis=-1, keepdims=True)
    lengths = (0.1 + 0.01 * np.asarray(jax.random.normal(k3, (n_mol, 2, 1)))).astype(np.float32)

    coords = np.zeros((n_atoms, 3), dtype=np.float32)
    coords[0::3] = centers
    coords[1::3] = centers + off[:, 0] * lengths[:, 0]
    coords[2::3] = centers + off[:, 1] * lengths[:, 1]

    # HarmonicBondForce parameters
    bonds = np.array([[3 * m, 3 * m + o] for m in range(n_mol) for o in (1, 2)], dtype=np.int32)
    b0 = np.full(bonds.shape[0], 0.1, dtype=np.float32)
    kb = np.full(bonds.shape[0], 2000.0, dtype=np.float32)

    # HarmonicAngleForce parameters
    angles = np.array([[3 * m + 1, 3 * m, 3 * m + 2] for m in range(n_mol)], dtype=np.int32)
    th0 = np.full(angles.shape[0], 1.91, dtype=np.float32)
    ka = np.full(angles.shape[0], 100.0, dtype=np.float32)

    # NonbondedForce per-particle parameters (O, H, H per molecule)
    charges = np.where(np.arange(n_atoms) % 3 == 0, -0.834, 0.417).astype(np.float32)
    sigma = np.where(np.arange(n_atoms) % 3 == 0, 0.3151, 0.0).astype(np.float32)
    epsilon = np.where(np.arange(n_atoms) % 3 == 0, 0.636, 0.0).astype(np.float32)

    return coords, box, (bonds, b0, kb), (angles, th0, ka), (charges, sigma, epsilon)


def reference_energy(coords, box, bonds, b0, kb, angles, th0, ka,
                     charges, sigma, epsilon, pairs):
    c = coords.astype(np.float64)
    box = box.astype(np.float64)
    d = c[bonds[:, 0]] - c[bonds[:, 1]]
    r = np.linalg.norm(d, axis=1)
    e = np.sum(0.5 * kb * (r - b0) ** 2)
    v1 = c[angles[:, 0]] - c[angles[:, 1]]
    v2 = c[angles[:, 2]] - c[angles[:, 1]]
    cosang = np.clip(np.sum(v1 * v2, 1) /
                     (np.linalg.norm(v1, axis=1) * np.linalg.norm(v2, axis=1)), -1.0, 1.0)
    theta = np.arccos(cosang)
    e += np.sum(0.5 * ka * (theta - th0) ** 2)
    i, j = pairs[:, 0], pairs[:, 1]
    dp = c[i] - c[j]
    dp -= box * np.floor(dp / box + 0.5)
    r = np.linalg.norm(dp, axis=1)
    within = r < CUTOFF
    qq = charges[i].astype(np.float64) * charges[j]
    sij = 0.5 * (sigma[i].astype(np.float64) + sigma[j])
    eij = np.sqrt(epsilon[i].astype(np.float64) * epsilon[j])
    inv_r = np.where(within, 1.0 / r, 0.0)
    sr6 = (sij * inv_r) ** 6
    e += np.sum(within * (COULOMB_PREFAC * qq * inv_r + 4.0 * eij * (sr6 ** 2 - sr6)))
    return e


if __name__ == "__main__":
    key = jax.random.PRNGKey(0)
    coords, box, (bonds, b0, kb), (angles, th0, ka), (charges, sigma, epsilon) = build_system(key)
    pairs = build_pairs(coords, box, CUTOFF + NEIGHBOR_SKIN)

    ene = torch_system_energy(coords, box, bonds, b0, kb, angles, th0, ka,
                              charges, sigma, epsilon, pairs)
    ene = jax.block_until_ready(ene)

    ref = reference_energy(coords, box, bonds, b0, kb, angles, th0, ka,
                           charges, sigma, epsilon, pairs)
    assert np.isfinite(float(ene))
    np.testing.assert_allclose(float(ene), ref, rtol=5e-4, atol=1e-2)
    print("KERNEL_OK")
</pallas_src>

<mosaic_0001>
module attributes {stable_mosaic.version = 11 : i64} {
  func.func @energy_kernel(%arg0: i32, %arg1: i32, %arg2: memref<8x128xf32, #tpu.memory_space<vmem>>, %arg3: memref<8x128xf32, #tpu.memory_space<vmem>>, %arg4: memref<6x8x128xf32, #tpu.memory_space<vmem>>, %arg5: memref<8x128xf32, #tpu.memory_space<vmem>>) attributes {dimension_semantics = [#tpu.dimension_semantics<parallel>, #tpu.dimension_semantics<arbitrary>], iteration_bounds = array<i64: 1, 1>, scalar_prefetch = 0 : i64, scratch_operands = 0 : i64, tpu.core_type = #tpu.core_type<tc>, window_params = [{pipeline_mode = #tpu.pipeline_mode<synchronous>, transform_indices = @transform_0, window_bounds = array<i64: 8, 128>}, {pipeline_mode = #tpu.pipeline_mode<synchronous>, transform_indices = @transform_1, window_bounds = array<i64: 8, 128>}, {transform_indices = @transform_2, window_bounds = array<i64: 6, 8, 128>}, {transform_indices = @transform_3, window_bounds = array<i64: 8, 128>}]} {
    %c0_i32 = arith.constant 0 : i32
    %0 = arith.cmpi eq, %arg1, %c0_i32 : i32
    %1 = arith.extui %0 : i1 to i32
    %c0_i32_0 = arith.constant 0 : i32
    %2 = arith.cmpi ne, %1, %c0_i32_0 : i32
    scf.if %2 {
      %cst_23 = arith.constant 0.000000e+00 : f32
      %46 = vector.broadcast %cst_23 : f32 to vector<8x128xf32>
      %c0_24 = arith.constant 0 : index
      %c0_25 = arith.constant 0 : index
      %47 = vector.load %arg5[%c0_24, %c0_25] : memref<8x128xf32, #tpu.memory_space<vmem>>, vector<8x128xf32>
      tpu.vector_store %arg5[%c0_24, %c0_25], %46 {strides = array<i32>} : memref<8x128xf32, #tpu.memory_space<vmem>>, vector<8x128xf32>,
    } else {
    }
    %c0_i32_1 = arith.constant 0 : i32
    %3 = arith.cmpi eq, %arg0, %c0_i32_1 : i32
    %c0_i32_2 = arith.constant 0 : i32
    %4 = arith.cmpi eq, %arg1, %c0_i32_2 : i32
    %5 = arith.andi %3, %4 : i1
    %6 = arith.extui %5 : i1 to i32
    %c0_i32_3 = arith.constant 0 : i32
    %7 = arith.cmpi ne, %6, %c0_i32_3 : i32
    scf.if %7 {
      %c0_23 = arith.constant 0 : index
      %c0_24 = arith.constant 0 : index
      %46 = vector.load %arg2[%c0_23, %c0_24] : memref<8x128xf32, #tpu.memory_space<vmem>>, vector<8x128xf32>
      %47 = vector.extract_strided_slice %46 {offsets = [0, 0], sizes = [1, 128], strides = [1, 1]} : vector<8x128xf32> to vector<1x128xf32>
      %48 = vector.extract_strided_slice %46 {offsets = [1, 0], sizes = [1, 128], strides = [1, 1]} : vector<8x128xf32> to vector<1x128xf32>
      %49 = vector.extract_strided_slice %46 {offsets = [2, 0], sizes = [1, 128], strides = [1, 1]} : vector<8x128xf32> to vector<1x128xf32>
      %50 = arith.mulf %47, %47 : vector<1x128xf32>
      %51 = arith.mulf %48, %48 : vector<1x128xf32>
      %52 = arith.addf %50, %51 : vector<1x128xf32>
      %53 = arith.mulf %49, %49 : vector<1x128xf32>
      %54 = arith.addf %52, %53 : vector<1x128xf32>
      %55 = math.sqrt %54 : vector<1x128xf32>
      %56 = vector.extract_strided_slice %46 {offsets = [3, 0], sizes = [1, 128], strides = [1, 1]} : vector<8x128xf32> to vector<1x128xf32>
      %57 = vector.extract_strided_slice %46 {offsets = [4, 0], sizes = [1, 128], strides = [1, 1]} : vector<8x128xf32> to vector<1x128xf32>
      %cst_25 = arith.constant 5.000000e-01 : f32
      %58 = vector.broadcast %cst_25 : f32 to vector<1x128xf32>
      %59 = arith.mulf %58, %57 : vector<1x128xf32>
      %60 = arith.subf %55, %56 : vector<1x128xf32>
      %61 = arith.mulf %60, %60 : vector<1x128xf32>
      %62 = arith.mulf %59, %61 : vector<1x128xf32>
      %c0_26 = arith.constant 0 : index
      %c0_27 = arith.constant 0 : index
      %63 = vector.load %arg3[%c0_26, %c0_27] : memref<8x128xf32, #tpu.memory_space<vmem>>, vector<8x128xf32>
      %64 = vector.extract_strided_slice %63 {offsets = [0, 0], sizes = [1, 128], strides = [1, 1]} : vector<8x128xf32> to vector<1x128xf32>
      %65 = vector.extract_strided_slice %63 {offsets = [1, 0], sizes = [1, 128], strides = [1, 1]} : vector<8x128xf32> to vector<1x128xf32>
      %66 = vector.extract_strided_slice %63 {offsets = [2, 0], sizes = [1, 128], strides = [1, 1]} : vector<8x128xf32> to vector<1x128xf32>
      %67 = vector.extract_strided_slice %63 {offsets = [3, 0], sizes = [1, 128], strides = [1, 1]} : vector<8x128xf32> to vector<1x128xf32>
      %68 = vector.extract_strided_slice %63 {offsets = [4, 0], sizes = [1, 128], strides = [1, 1]} : vector<8x128xf32> to vector<1x128xf32>
      %69 = vector.extract_strided_slice %63 {offsets = [5, 0], sizes = [1, 128], strides = [1, 1]} : vector<8x128xf32> to vector<1x128xf32>
      %70 = arith.mulf %64, %67 : vector<1x128xf32>
      %71 = arith.mulf %65, %68 : vector<1x128xf32>
      %72 = arith.addf %70, %71 : vector<1x128xf32>
      %73 = arith.mulf %66, %69 : vector<1x128xf32>
      %74 = arith.addf %72, %73 : vector<1x128xf32>
      %75 = arith.mulf %64, %64 : vector<1x128xf32>
      %76 = arith.mulf %65, %65 : vector<1x128xf32>
      %77 = arith.addf %75, %76 : vector<1x128xf32>
      %78 = arith.mulf %66, %66 : vector<1x128xf32>
      %79 = arith.addf %77, %78 : vector<1x128xf32>
      %80 = arith.mulf %67, %67 : vector<1x128xf32>
      %81 = arith.mulf %68, %68 : vector<1x128xf32>
      %82 = arith.addf %80, %81 : vector<1x128xf32>
      %83 = arith.mulf %69, %69 : vector<1x128xf32>
      %84 = arith.addf %82, %83 : vector<1x128xf32>
      %85 = arith.mulf %79, %84 : vector<1x128xf32>
      %cst_28 = arith.constant 9.99999996E-13 : f32
      %86 = vector.broadcast %cst_28 : f32 to vector<1x128xf32>
      %87 = arith.addf %85, %86 : vector<1x128xf32>
      %88 = math.rsqrt %87 : vector<1x128xf32>
      %89 = arith.mulf %74, %88 : vector<1x128xf32>
      %cst_29 = arith.constant -1.000000e+00 : f32
      %cst_30 = arith.constant 1.000000e+00 : f32
      %90 = vector.broadcast %cst_29 : f32 to vector<1x128xf32>
      %91 = arith.maximumf %90, %89 : vector<1x128xf32>
      %92 = vector.broadcast %cst_30 : f32 to vector<1x128xf32>
      %93 = arith.minimumf %92, %91 : vector<1x128xf32>
      %94 = math.absf %93 : vector<1x128xf32>
      %cst_31 = arith.constant 1.000000e+00 : f32
      %95 = vector.broadcast %cst_31 : f32 to vector<1x128xf32>
      %96 = arith.subf %95, %94 : vector<1x128xf32>
      %cst_32 = arith.constant 5.000000e-01 : f32
      %97 = vector.broadcast %cst_32 : f32 to vector<1x128xf32>
      %98 = arith.mulf %97, %96 : vector<1x128xf32>
      %cst_33 = arith.constant 0.000000e+00 : f32
      %99 = vector.broadcast %cst_33 : f32 to vector<1x128xf32>
      %100 = arith.maximumf %98, %99 : vector<1x128xf32>
      %101 = math.sqrt %100 : vector<1x128xf32>
      %102 = arith.mulf %101, %101 : vector<1x128xf32>
      %cst_34 = arith.constant 4.216320e-02 : f32
      %103 = vector.broadcast %cst_34 : f32 to vector<1x128xf32>
      %104 = arith.mulf %103, %102 : vector<1x128xf32>
      %cst_35 = arith.constant 0.024181312 : f32
      %105 = vector.broadcast %cst_35 : f32 to vector<1x128xf32>
      %106 = arith.addf %104, %105 : vector<1x128xf32>
      %107 = arith.mulf %106, %102 : vector<1x128xf32>
      %cst_36 = arith.constant 0.0454700254 : f32
      %108 = vector.broadcast %cst_36 : f32 to vector<1x128xf32>
      %109 = arith.addf %107, %108 : vector<1x128xf32>
      %110 = arith.mulf %109, %102 : vector<1x128xf32>
      %cst_37 = arith.constant 0.0749530047 : f32
      %111 = vector.broadcast %cst_37 : f32 to vector<1x128xf32>
      %112 = arith.addf %110, %111 : vector<1x128xf32>
      %113 = arith.mulf %112, %102 : vector<1x128xf32>
      %cst_38 = arith.constant 0.166667521 : f32
      %114 = vector.broadcast %cst_38 : f32 to vector<1x128xf32>
      %115 = arith.addf %113, %114 : vector<1x128xf32>
      %116 = arith.mulf %101, %102 : vector<1x128xf32>
      %117 = arith.mulf %116, %115 : vector<1x128xf32>
      %118 = arith.addf %101, %117 : vector<1x128xf32>
      %cst_39 = arith.constant 2.000000e+00 : f32
      %119 = vector.broadcast %cst_39 : f32 to vector<1x128xf32>
      %120 = arith.mulf %119, %118 : vector<1x128xf32>
      %121 = arith.mulf %94, %94 : vector<1x128xf32>
      %cst_40 = arith.constant 4.216320e-02 : f32
      %122 = vector.broadcast %cst_40 : f32 to vector<1x128xf32>
      %123 = arith.mulf %122, %121 : vector<1x128xf32>
      %cst_41 = arith.constant 0.024181312 : f32
      %124 = vector.broadcast %cst_41 : f32 to vector<1x128xf32>
      %125 = arith.addf %123, %124 : vector<1x128xf32>
      %126 = arith.mulf %125, %121 : vector<1x128xf32>
      %cst_42 = arith.constant 0.0454700254 : f32
      %127 = vector.broadcast %cst_42 : f32 to vector<1x128xf32>
      %128 = arith.addf %126, %127 : vector<1x128xf32>
      %129 = arith.mulf %128, %121 : vector<1x128xf32>
      %cst_43 = arith.constant 0.0749530047 : f32
      %130 = vector.broadcast %cst_43 : f32 to vector<1x128xf32>
      %131 = arith.addf %129, %130 : vector<1x128xf32>
      %132 = arith.mulf %131, %121 : vector<1x128xf32>
      %cst_44 = arith.constant 0.166667521 : f32
      %133 = vector.broadcast %cst_44 : f32 to vector<1x128xf32>
      %134 = arith.addf %132, %133 : vector<1x128xf32>
      %135 = arith.mulf %94, %121 : vector<1x128xf32>
      %136 = arith.mulf %135, %134 : vector<1x128xf32>
      %137 = arith.addf %94, %136 : vector<1x128xf32>
      %cst_45 = arith.constant 1.57079637 : f32
      %138 = vector.broadcast %cst_45 : f32 to vector<1x128xf32>
      %139 = arith.subf %138, %137 : vector<1x128xf32>
      %cst_46 = arith.constant 5.000000e-01 : f32
      %140 = vector.broadcast %cst_46 : f32 to vector<1x128xf32>
      %141 = arith.cmpf ogt, %94, %140 : vector<1x128xf32>
      %142 = arith.select %141, %120, %139 : vector<1x128xi1>, vector<1x128xf32>
      %cst_47 = arith.constant 0.000000e+00 : f32
      %143 = vector.broadcast %cst_47 : f32 to vector<1x128xf32>
      %144 = arith.cmpf olt, %93, %143 : vector<1x128xf32>
      %cst_48 = arith.constant 3.14159274 : f32
      %145 = vector.broadcast %cst_48 : f32 to vector<1x128xf32>
      %146 = arith.subf %145, %142 : vector<1x128xf32>
      %147 = arith.select %144, %146, %142 : vector<1x128xi1>, vector<1x128xf32>
      %148 = vector.extract_strided_slice %63 {offsets = [6, 0], sizes = [1, 128], strides = [1, 1]} : vector<8x128xf32> to vector<1x128xf32>
      %149 = vector.extract_strided_slice %63 {offsets = [7, 0], sizes = [1, 128], strides = [1, 1]} : vector<8x128xf32> to vector<1x128xf32>
      %cst_49 = arith.constant 5.000000e-01 : f32
      %150 = vector.broadcast %cst_49 : f32 to vector<1x128xf32>
      %151 = arith.mulf %150, %149 : vector<1x128xf32>
      %152 = arith.subf %147, %148 : vector<1x128xf32>
      %153 = arith.mulf %152, %152 : vector<1x128xf32>
      %154 = arith.mulf %151, %153 : vector<1x128xf32>
      %c0_50 = arith.constant 0 : index
      %c0_51 = arith.constant 0 : index
      %155 = vector.load %arg5[%c0_50, %c0_51] : memref<8x128xf32, #tpu.memory_space<vmem>>, vector<1x128xf32>
      %156 = arith.addf %62, %154 : vector<1x128xf32>
      %157 = arith.addf %155, %156 : vector<1x128xf32>
      %c0_52 = arith.constant 0 : index
      %c0_53 = arith.constant 0 : index
      %158 = vector.load %arg5[%c0_52, %c0_53] : memref<8x128xf32, #tpu.memory_space<vmem>>, vector<1x128xf32>
      tpu.vector_store %arg5[%c0_52, %c0_53], %157 {strides = array<i32>} : memref<8x128xf32, #tpu.memory_space<vmem>>, vector<1x128xf32>,
    } else {
    }
    %c0 = arith.constant 0 : index
    %c0_4 = arith.constant 0 : index
    %c0_5 = arith.constant 0 : index
    %8 = vector.load %arg4[%c0, %c0_4, %c0_5] : memref<6x8x128xf32, #tpu.memory_space<vmem>>, vector<1x8x128xf32>
    %9 = vector.shape_cast %8 : vector<1x8x128xf32> to vector<8x128xf32>
    %c1 = arith.constant 1 : index
    %c0_6 = arith.constant 0 : index
    %c0_7 = arith.constant 0 : index
    %10 = vector.load %arg4[%c1, %c0_6, %c0_7] : memref<6x8x128xf32, #tpu.memory_space<vmem>>, vector<1x8x128xf32>
    %11 = vector.shape_cast %10 : vector<1x8x128xf32> to vector<8x128xf32>
    %c2 = arith.constant 2 : index
    %c0_8 = arith.constant 0 : index
    %c0_9 = arith.constant 0 : index
    %12 = vector.load %arg4[%c2, %c0_8, %c0_9] : memref<6x8x128xf32, #tpu.memory_space<vmem>>, vector<1x8x128xf32>
    %13 = vector.shape_cast %12 : vector<1x8x128xf32> to vector<8x128xf32>
    %c3 = arith.constant 3 : index
    %c0_10 = arith.constant 0 : index
    %c0_11 = arith.constant 0 : index
    %14 = vector.load %arg4[%c3, %c0_10, %c0_11] : memref<6x8x128xf32, #tpu.memory_space<vmem>>, vector<1x8x128xf32>
    %15 = vector.shape_cast %14 : vector<1x8x128xf32> to vector<8x128xf32>
    %c4 = arith.constant 4 : index
    %c0_12 = arith.constant 0 : index
    %c0_13 = arith.constant 0 : index
    %16 = vector.load %arg4[%c4, %c0_12, %c0_13] : memref<6x8x128xf32, #tpu.memory_space<vmem>>, vector<1x8x128xf32>
    %17 = vector.shape_cast %16 : vector<1x8x128xf32> to vector<8x128xf32>
    %c5 = arith.constant 5 : index
    %c0_14 = arith.constant 0 : index
    %c0_15 = arith.constant 0 : index
    %18 = vector.load %arg4[%c5, %c0_14, %c0_15] : memref<6x8x128xf32, #tpu.memory_space<vmem>>, vector<1x8x128xf32>
    %19 = vector.shape_cast %18 : vector<1x8x128xf32> to vector<8x128xf32>
    %20 = arith.mulf %9, %9 : vector<8x128xf32>
    %21 = arith.mulf %11, %11 : vector<8x128xf32>
    %22 = arith.addf %20, %21 : vector<8x128xf32>
    %23 = arith.mulf %13, %13 : vector<8x128xf32>
    %24 = arith.addf %22, %23 : vector<8x128xf32>
    %cst = arith.constant 9.99999996E-13 : f32
    %25 = vector.broadcast %cst : f32 to vector<8x128xf32>
    %26 = arith.addf %24, %25 : vector<8x128xf32>
    %27 = math.rsqrt %26 : vector<8x128xf32>
    %28 = arith.mulf %27, %27 : vector<8x128xf32>
    %29 = arith.mulf %28, %28 : vector<8x128xf32>
    %30 = arith.mulf %29, %28 : vector<8x128xf32>
    %31 = arith.mulf %15, %27 : vector<8x128xf32>
    %32 = arith.mulf %17, %30 : vector<8x128xf32>
    %33 = arith.subf %32, %19 : vector<8x128xf32>
    %34 = arith.mulf %30, %33 : vector<8x128xf32>
    %35 = arith.addf %31, %34 : vector<8x128xf32>
    %cst_16 = arith.constant 8.100000e-01 : f32
    %36 = vector.broadcast %cst_16 : f32 to vector<8x128xf32>
    %37 = arith.cmpf olt, %24, %36 : vector<8x128xf32>
    %cst_17 = arith.constant 0.000000e+00 : f32
    %38 = vector.broadcast %cst_17 : f32 to vector<8x128xf32>
    %39 = arith.cmpf ogt, %24, %38 : vector<8x128xf32>
    %40 = arith.andi %37, %39 : vector<8x128xi1>
    %c0_18 = arith.constant 0 : index
    %c0_19 = arith.constant 0 : index
    %41 = vector.load %arg5[%c0_18, %c0_19] : memref<8x128xf32, #tpu.memory_space<vmem>>, vector<8x128xf32>
    %cst_20 = arith.constant 0.000000e+00 : f32
    %42 = vector.broadcast %cst_20 : f32 to vector<8x128xf32>
    %43 = arith.select %40, %35, %42 : vector<8x128xi1>, vector<8x128xf32>
    %44 = arith.addf %41, %43 : vector<8x128xf32>
    %c0_21 = arith.constant 0 : index
    %c0_22 = arith.constant 0 : index
    %45 = vector.load %arg5[%c0_21, %c0_22] : memref<8x128xf32, #tpu.memory_space<vmem>>, vector<8x128xf32>
    tpu.vector_store %arg5[%c0_21, %c0_22], %44 {strides = array<i32>} : memref<8x128xf32, #tpu.memory_space<vmem>>, vector<8x128xf32>,
    return
  }
  func.func @transform_0(%arg0: i32, %arg1: i32) -> (i32, i32) {
    %c0_i32 = arith.constant 0 : i32
    %c0_i32_0 = arith.constant 0 : i32
    %c0_i32_1 = arith.constant 0 : i32
    return %c0_i32, %c0_i32_0 : i32, i32
  }
  func.func @transform_1(%arg0: i32, %arg1: i32) -> (i32, i32) {
    %c0_i32 = arith.constant 0 : i32
    %c0_i32_0 = arith.constant 0 : i32
    %c0_i32_1 = arith.constant 0 : i32
    return %c0_i32, %c0_i32_0 : i32, i32
  }
  func.func @transform_2(%arg0: i32, %arg1: i32) -> (i32, i32, i32) {
    %c1_i32 = arith.constant 1 : i32
    %0 = arith.muli %arg0, %c1_i32 : i32
    %1 = arith.addi %0, %arg1 : i32
    %c0_i32 = arith.constant 0 : i32
    %c0_i32_0 = arith.constant 0 : i32
    %c0_i32_1 = arith.constant 0 : i32
    return %c0_i32, %1, %c0_i32_0 : i32, i32, i32
  }
  func.func @transform_3(%arg0: i32, %arg1: i32) -> (i32, i32) {
    %c0_i32 = arith.constant 0 : i32
    %c0_i32_0 = arith.constant 0 : i32
    return %arg0, %c0_i32 : i32, i32
  }
}

</mosaic_0001>

<llo_original>
// kernel: tpu_custom_call.1
$region0: #{tpu_custom_call.1}
  #allocation0 [shape = 'u32[]', space=smem, size = 0x4, offset = 0x4, fixed_abs, tag = 'smem constant byte address 0x4 - core index']
  #allocation1 [shape = 'u32[144,128]{1,0:T(1,128)}', space=vmem, size = 0x12000, scoped, tag = 'internal scratch']
  %s0 = inlined_call_operand.hbm [shape: f32[8,128], index: 0, kind: input, shape index: {}]
  %s1 = inlined_call_operand.hbm [shape: f32[8,128], index: 1, kind: input, shape index: {}]
  %s2 = inlined_call_operand.hbm [shape: f32[6,8,128], index: 2, kind: input, shape index: {}]
  %s3 = inlined_call_operand.hbm [shape: f32[8,128], index: 3, kind: output, shape index: {}]
  %s4 = sld [smem:[#allocation0]]
  $region42: #{tpu_custom_call.1} parent=0
    _
  %s6 = ssub.s32 1, %s4
  %s7 = scalar_select 0, %s6, %s4
  $region1: #{tpu_custom_call.1} parent=0
    #allocation2 [shape = 'u8[4096]{0}', space=vmem, size = 0x1000, scoped, tag = 'input window, operand 0, single buffered']
    #allocation3 [shape = 's32[1]{0}', space=sflag, size = 0x4, scoped, tag = 'scoped memory for tpu_custom_call.1']
    #allocation4 [shape = 's32[1]{0}', space=sflag, size = 0x4, scoped, tag = 'scoped memory for tpu_custom_call.1']
    #allocation5 [shape = 'u8[4096]{0}', space=vmem, size = 0x1000, scoped, tag = 'input window, operand 1, single buffered']
    #allocation6 [shape = 's32[1]{0}', space=sflag, size = 0x4, scoped, tag = 'scoped memory for tpu_custom_call.1']
    #allocation7 [shape = 'u8[24576]{0}', space=vmem, size = 0x6000, scoped, tag = 'input window, operand 2, single buffered']
    #allocation8 [shape = 'u8[4096]{0}', space=vmem, size = 0x1000, scoped, tag = 'output window, operand 0, single buffered']
    %8 = vsyncpa [#allocation3], 0
    %9 = vsyncpa [#allocation6], 0
    %10 = vsyncpa [#allocation4], 0
    // Predicated region
    $region2: #{tpu_custom_call.1} parent=1 // pred_check
      _
    $region3: #{tpu_custom_call.1} parent=1 // pred_check_branch
      %12 = sbr.rel (0) target = $region5
    $region4: #{tpu_custom_call.1} parent=1 // pred_region
      %s14 = ssub.s32 128, 128
      %15 = vsyncadd [#allocation3], %s14
      %s17 = sshll.u32 [#allocation2], 4
      %s18 = int_to_ptr.vmem [resolvable:$true] %s17
      %20 = dma.hbm_to_vmem [thread:$0]  %s0, 128, %s18, [#allocation3]
    $region5: #{tpu_custom_call.1} parent=1 // pred_fallthru
      _
    // Predicated region
    $region6: #{tpu_custom_call.1} parent=1 // pred_check
      _
    $region7: #{tpu_custom_call.1} parent=1 // pred_check_branch
      %22 = sbr.rel (0) target = $region9
    $region8: #{tpu_custom_call.1} parent=1 // pred_region
      %s24 = ssub.s32 128, 128
      %25 = vsyncadd [#allocation6], %s24
      %s27 = sshll.u32 [#allocation5], 4
      %s28 = int_to_ptr.vmem [resolvable:$true] %s27
      %30 = dma.hbm_to_vmem [thread:$0]  %s1, 128, %s28, [#allocation6]
    $region9: #{tpu_custom_call.1} parent=1 // pred_fallthru
      _
    // Predicated region
    $region10: #{tpu_custom_call.1} parent=1 // pred_check
      _
    $region11: #{tpu_custom_call.1} parent=1 // pred_check_branch
      %32 = sbr.rel (0) target = $region13
    $region12: #{tpu_custom_call.1} parent=1 // pred_region
      %s33 = sadd.s32 0, 0
      %s35 = ssub.s32 768, 768
      %36 = vsyncadd [#allocation6], %s35
      %s37 = smul.addr %s33, 128
      %s38 = scalar_lea.hbm %s2, %s37
      %s39 = sshll.u32 [#allocation7], 4
      %s40 = int_to_ptr.vmem [resolvable:$true] %s39
      %45 = dma.hbm_to_vmem [thread:$0]  %s38, 768, %s40, [#allocation6], 128, 128, 8
    $region13: #{tpu_custom_call.1} parent=1 // pred_fallthru
      _
    // Predicated region
    $region14: #{tpu_custom_call.1} parent=1 // pred_check
      _
    $region15: #{tpu_custom_call.1} parent=1 // pred_check_branch
      %47 = sbr.rel (0) target = $region17
    $region16: #{tpu_custom_call.1} parent=1 // pred_region
      %48 = dma.done [#allocation3], 128
    $region17: #{tpu_custom_call.1} parent=1 // pred_fallthru
      _
    // Predicated region
    $region18: #{tpu_custom_call.1} parent=1 // pred_check
      _
    $region19: #{tpu_custom_call.1} parent=1 // pred_check_branch
      %50 = sbr.rel (0) target = $region21
    $region20: #{tpu_custom_call.1} parent=1 // pred_region
      %51 = dma.done [#allocation6], 128
    $region21: #{tpu_custom_call.1} parent=1 // pred_fallthru
      _
    // Predicated region
    $region22: #{tpu_custom_call.1} parent=1 // pred_check
      _
    $region23: #{tpu_custom_call.1} parent=1 // pred_check_branch
      %53 = sbr.rel (0) target = $region25
    $region24: #{tpu_custom_call.1} parent=1 // pred_region
      %54 = dma.done [#allocation6], 768
    $region25: #{tpu_custom_call.1} parent=1 // pred_fallthru
      _
    %s55 = sadd.s32 0, 0
    %p56 = scmp.eq.s32.totalorder 0, 0
    // Predicated region
    $region26: #{tpu_custom_call.1} parent=1 // pred_check
      %p57 = pneg %p56
    $region27: #{tpu_custom_call.1} parent=1 // pred_check_branch
      %59 = sbr.rel (%p57) target = $region29
    $region28: #{tpu_custom_call.1} parent=1 // pred_region
      %60 = vst [vmem:[#allocation8] sm:$0xff] 0.0
    $region29: #{tpu_custom_call.1} parent=1 // pred_fallthru
      _
    %p61 = scmp.eq.s32.totalorder 0, 0
    %p62 = pnand %p61, %p56
    %p63 = pneg %p62
    // Predicated region
    $region30: #{tpu_custom_call.1} parent=1 // pred_check
      _
    $region31: #{tpu_custom_call.1} parent=1 // pred_check_branch
      %65 = sbr.rel (%p62) target = $region33
    $region32: #{tpu_custom_call.1} parent=1 // pred_region
      %v66 = vld [vmem:[#allocation2] sm:$0xff]
      %v67 = vmul.f32 %v66, %v66
      %v69 = vrot.slane %v67, 1
      %v71 = vadd.f32 %v67, %v69
      %v72 = vrot.slane %v67, 2
      %v74 = vadd.f32 %v71, %v72
      %v75 = vrsqrt.pop %v74
      %v76 = vmul.f32 %v74, %v75
      %vm77 = vcmp.eq.f32.partialorder %v74, inf
      %v78 = vsel %vm77, %v74, %v76
      %vm79 = vcmp.eq.f32.partialorder %v74, 0.0
      %v80 = vand.u32 %v74, 2147483648
      %v81 = vsel %vm79, %v80, %v78
      %v82 = vmul.f32 %v66, 0.5
      %v84 = vrot.slane %v66, 3
      %v86 = vsub.f32 %v81, %v84
      %v87 = vmul.f32 %v86, %v86
      %v89 = vrot.slane %v87, 4
      %v91 = vmul.f32 %v82, %v89
      %v92 = vld [vmem:[#allocation5] sm:$0xff]
      %v94 = vrot.slane %v92, 3
      %v96 = vmul.f32 %v92, %v94
      %v98 = vrot.slane %v96, 1
      %v100 = vadd.f32 %v96, %v98
      %v101 = vrot.slane %v96, 2
      %v103 = vadd.f32 %v100, %v101
      %v104 = vmul.f32 %v92, %v92
      %v106 = vrot.slane %v104, 1
      %v108 = vadd.f32 %v104, %v106
      %v109 = vrot.slane %v104, 2
      %v111 = vadd.f32 %v108, %v109
      %v113 = vrot.slane %v111, 3
      %v115 = vmul.f32 %v111, %v113
      %v116 = vadd.f32 %v115, 1e-12
      %v117 = vrsqrt.pop %v116
      %v118 = vmul.f32 %v103, %v117
      %v119 = vmax.f32 %v118, -1.0
      %v120 = vmin.f32 %v119, 1.0
      %v121 = vand.u32 2147483647, %v120
      %v122 = vsub.f32 1.0, %v121
      %v123 = vmul.f32 %v122, 0.5
      %v124 = vmax.f32 %v123, 0.0
      %v125 = vrsqrt.pop %v124
      %v126 = vmul.f32 %v124, %v125
      %vm127 = vcmp.eq.f32.partialorder %v124, inf
      %v128 = vsel %vm127, %v124, %v126
      %vm129 = vcmp.eq.f32.partialorder %v124, 0.0
      %v130 = vand.u32 %v124, 2147483648
      %v131 = vsel %vm129, %v130, %v128
      %v132 = vmul.f32 %v131, %v131
      %v133 = vmul.f32 %v132, 0.0421632
      %v134 = vadd.f32 %v133, 0.024181312
      %v135 = vmul.f32 %v134, %v132
      %v136 = vadd.f32 %v135, 0.045470025
      %v137 = vmul.f32 %v136, %v132
      %v138 = vadd.f32 %v137, 0.074953005
      %v139 = vmul.f32 %v138, %v132
      %v140 = vadd.f32 %v139, 0.16666752
      %v141 = vmul.f32 %v131, %v132
      %v142 = vmul.f32 %v141, %v140
      %v143 = vadd.f32 %v131, %v142
      %v144 = vmul.f32 %v143, 2.0
      %v145 = vmul.f32 %v121, %v121
      %v146 = vmul.f32 %v145, 0.0421632
      %v147 = vadd.f32 %v146, 0.024181312
      %v148 = vmul.f32 %v147, %v145
      %v149 = vadd.f32 %v148, 0.045470025
      %v150 = vmul.f32 %v149, %v145
      %v151 = vadd.f32 %v150, 0.074953005
      %v152 = vmul.f32 %v151, %v145
      %v153 = vadd.f32 %v152, 0.16666752
      %v154 = vmul.f32 %v121, %v145
      %v155 = vmul.f32 %v154, %v153
      %v156 = vadd.f32 %v121, %v155
      %v157 = vsub.f32 1.5707964, %v156
      %vm158 = vcmp.gt.f32.partialorder %v121, 0.5
      %v159 = vsel %vm158, %v144, %v157
      %vm160 = vcmp.lt.f32.partialorder %v120, 0.0
      %v161 = vsub.f32 3.1415927, %v159
      %v162 = vsel %vm160, %v161, %v159
      %v163 = vmul.f32 %v92, 0.5
      %v164 = vrot.slane %v92, 6
      %v166 = vsub.f32 %v162, %v164
      %v167 = vmul.f32 %v166, %v166
      %v169 = vrot.slane %v167, 1
      %v171 = vmul.f32 %v163, %v169
      %v172 = vld [vmem:[#allocation8] sm:$0x1]
      %v174 = vrot.slane %v171, 3
      %v176 = vadd.f32 %v91, %v174
      %v178 = vrot.slane %v176, 4
      %v180 = vadd.f32 %v172, %v178
      %181 = vst [vmem:[#allocation8] sm:$0x1] %v180
    $region33: #{tpu_custom_call.1} parent=1 // pred_fallthru
      _
    %v182 = vld [vmem:[#allocation7] sm:$0xff]
    %s183 = scalar_lea.vmem [#allocation7], 8
    %v184 = vld [vmem:[%s183] sm:$0xff]
    %s185 = scalar_lea.vmem [#allocation7], 16
    %v186 = vld [vmem:[%s185] sm:$0xff]
    %s187 = scalar_lea.vmem [#allocation7], 24
    %v188 = vld [vmem:[%s187] sm:$0xff]
    %s189 = scalar_lea.vmem [#allocation7], 32
    %v190 = vld [vmem:[%s189] sm:$0xff]
    %s191 = scalar_lea.vmem [#allocation7], 40
    %v192 = vld [vmem:[%s191] sm:$0xff]
    %v193 = vmul.f32 %v182, %v182
    %v194 = vmul.f32 %v184, %v184
    %v195 = vadd.f32 %v193, %v194
    %v196 = vmul.f32 %v186, %v186
    %v197 = vadd.f32 %v195, %v196
    %v198 = vadd.f32 %v197, 1e-12
    %v199 = vrsqrt.pop %v198
    %v200 = vmul.f32 %v199, %v199
    %v201 = vmul.f32 %v200, %v200
    %v202 = vmul.f32 %v201, %v200
    %v203 = vmul.f32 %v188, %v199
    %v204 = vmul.f32 %v190, %v202
    %v205 = vsub.f32 %v204, %v192
    %v206 = vmul.f32 %v202, %v205
    %v207 = vadd.f32 %v203, %v206
    %vm208 = vcmp.lt.f32.partialorder %v197, 0.81
    %vm209 = vcmp.gt.f32.partialorder %v197, 0.0
    %vm210 = vmand %vm208, %vm209
    %v211 = vld [vmem:[#allocation8] sm:$0xff]
    %v212 = vsel %vm210, %v207, 0.0
    %v213 = vadd.f32 %v211, %v212
    %214 = vst [vmem:[#allocation8] sm:$0xff] %v213
    // Predicated region
    $region34: #{tpu_custom_call.1} parent=1 // pred_check
      _
    $region35: #{tpu_custom_call.1} parent=1 // pred_check_branch
      %216 = sbr.rel (0) target = $region37
    $region36: #{tpu_custom_call.1} parent=1 // pred_region
      %s218 = ssub.s32 128, 128
      %219 = vsyncadd [#allocation4], %s218
      %s221 = sshll.u32 [#allocation8], 4
      %s222 = int_to_ptr.vmem [resolvable:$true] %s221
      %224 = dma.vmem_to_hbm [thread:$0]  %s222, 128, %s3, [#allocation4]
    $region37: #{tpu_custom_call.1} parent=1 // pred_fallthru
      _
    // Predicated region
    $region38: #{tpu_custom_call.1} parent=1 // pred_check
      _
    $region39: #{tpu_custom_call.1} parent=1 // pred_check_branch
      %226 = sbr.rel (0) target = $region41
    $region40: #{tpu_custom_call.1} parent=1 // pred_region
      %227 = dma.done [#allocation4], 128
    $region41: #{tpu_custom_call.1} parent=1 // pred_fallthru
      _
    %228 = vsyncpa [#allocation3], 1
    %229 = vsyncpa [#allocation6], 1
    %230 = vsyncpa [#allocation4], 1

</llo_original>
